<compile_context>
chip_gen: v6e
topology: v6e:2x2x1
jax: 0.10.0
libtpu: 0.0.40
codegen_flags: <defaults>
</compile_context>

<pallas_src>
import functools

import jax
import jax.numpy as jnp
from jax.experimental import pallas as pl
from jax.experimental.pallas import tpu as pltpu

NEG = -1e30  # fill for padded output lanes -> exp() underflows to exactly 0


def _round_up(x: int, m: int) -> int:
    return (x + m - 1) // m * m


def _k_plan(K: int):
    """K padding / K-tile depth. Pure function of K so params and forward agree."""
    K_pad = _round_up(K, 128)
    if K_pad <= 2048:
        return K_pad, K_pad          # single K tile -> fast path (no accumulator)
    tk = 2048                        # (2048, 128) bf16 weight tile = 512 KiB
    return _round_up(K, tk), tk


@functools.lru_cache(maxsize=None)
def _hw_config():
    """(preferred batch-tile rows, scoped-VMEM request cap) for the local TPU."""
    tm_pref = 256                    # 256-wide MXU on v6e / v7x
    vmem_capacity = 64 << 20         # conservative default (v7x per-core VMEM)
    try:
        kind = jax.devices()[0].device_kind.lower()
        if "v5 lite" in kind or "v5e" in kind or "v5litepod" in kind:
            tm_pref = 128            # v5e MXU passes are 128 rows deep
    except Exception:
        pass
    try:
        vmem_capacity = int(pltpu.get_tpu_info().vmem_capacity_bytes)
    except Exception:
        pass
    # Leave headroom for Mosaic internal scratch / semaphores (never request it all).
    vmem_cap = max(min(3 * vmem_capacity // 4, vmem_capacity - (8 << 20)), 16 << 20)
    return tm_pref, vmem_cap


def _m_plan(M: int, tm_pref: int):
    M_min = _round_up(M, 16)         # bf16-friendly sublane alignment
    if M_min < 256:
        return M_min, M_min          # one small batch tile
    tm = tm_pref if M_min >= 2 * tm_pref else 128   # keep >=2 tiles for v7x megacore
    return _round_up(M, tm), tm


# ----------------------------- kernels ---------------------------------------------
def _fc_softmax_kernel(x_ref, w_ref, b_ref, o_ref):
    """Single-K-tile fast path: matmul + bias + row softmax in one shot."""
    logits = jnp.dot(x_ref[...], w_ref[...],
                     preferred_element_type=jnp.float32) + b_ref[...]
    m = jnp.max(logits, axis=-1, keepdims=True)
    e = jnp.exp(logits - m)                         # EUP
    s = jnp.sum(e, axis=-1, keepdims=True)          # XLU
    o_ref[...] = (e * pl.reciprocal(s, approx=True)).astype(o_ref.dtype)


def _fc_softmax_kernel_acc(x_ref, w_ref, b_ref, o_ref, acc_ref):
    """K-streamed path: bias folded into accumulator init, softmax in the finalize."""
    k = pl.program_id(1)

    @pl.when(k == 0)
    def _init():
        acc_ref[...] = jnp.broadcast_to(b_ref[...], acc_ref.shape)

    acc_ref[...] += jnp.dot(x_ref[...], w_ref[...],
                            preferred_element_type=jnp.float32)

    @pl.when(k == pl.num_programs(1) - 1)
    def _finalize():
        logits = acc_ref[...]
        m = jnp.max(logits, axis=-1, keepdims=True)
        e = jnp.exp(logits - m)
        s = jnp.sum(e, axis=-1, keepdims=True)
        o_ref[...] = (e * pl.reciprocal(s, approx=True)).astype(o_ref.dtype)


# ----------------------------- wrapper ----------------------------------------------
def prepare_params(weight, bias, compute_dtype=jnp.bfloat16):
    """One-time pad/cast of the FC parameters (do NOT pay this every forward call).

    weight: [in_channels, out_channels] -> (K_pad, N_pad) compute_dtype, zero padded
    bias:   [out_channels]              -> (1, N_pad) f32, padded lanes filled with NEG
    """
    K, N = weight.shape
    K_pad, _ = _k_plan(K)
    N_pad = _round_up(N, 128)
    w_p = jnp.zeros((K_pad, N_pad), compute_dtype).at[:K, :N].set(
        weight.astype(compute_dtype))
    b_p = jnp.full((1, N_pad), NEG, jnp.float32).at[0, :N].set(
        bias.astype(jnp.float32))
    return w_p, b_p


@functools.partial(jax.jit, static_argnames=("out_channels",))
def _forward_padded(x, w_p, b_p, *, out_channels):
    M, K = x.shape
    K_pad, tk = _k_plan(K)
    assert w_p.shape[0] == K_pad, "weight not prepared with prepare_params for this K"
    N_pad = w_p.shape[1]
    assert b_p.shape == (1, N_pad)
    compute_dtype = w_p.dtype
    out_dtype = x.dtype

    tm_pref, vmem_cap = _hw_config()
    M_pad, tm = _m_plan(M, tm_pref)
    n_m_tiles = M_pad // tm
    single_k = K_pad == tk

    # Residual per-call padding of x only (fuses around the custom call under jit).
    x_p = x.astype(compute_dtype)
    if (M_pad, K_pad) != (M, K):
        x_p = jnp.pad(x_p, ((0, M_pad - M), (0, K_pad - K)))

    csize = jnp.dtype(compute_dtype).itemsize
    osize = jnp.dtype(out_dtype).itemsize
    vmem_bytes = (2 * tm * tk * csize            # x tiles (double buffered)
                  + 2 * tk * N_pad * csize       # weight tiles
                  + 2 * N_pad * 4                # bias row (tiny, constant index)
                  + 2 * tm * N_pad * osize       # output tiles
                  + (0 if single_k else tm * N_pad * 4))  # f32 accumulator scratch
    vmem_limit = int(min(max(vmem_bytes + (2 << 20), 4 << 20), vmem_cap))

    cost = pl.CostEstimate(
        flops=2 * M_pad * K_pad * N_pad + 6 * M_pad * N_pad,
        transcendentals=M_pad * N_pad,
        bytes_accessed=(M_pad * K_pad * csize
                        + n_m_tiles * K_pad * N_pad * csize  # W re-streamed per batch tile
                        + N_pad * 4 + M_pad * N_pad * osize),
    )

    if single_k:
        grid_spec = pltpu.PrefetchScalarGridSpec(
            num_scalar_prefetch=0,
            grid=(n_m_tiles,),
            in_specs=[
                pl.BlockSpec((tm, K_pad), lambda i: (i, 0)),      # x tile
                pl.BlockSpec((K_pad, N_pad), lambda i: (0, 0)),   # full weight (resident)
                pl.BlockSpec((1, N_pad), lambda i: (0, 0)),       # bias row
            ],
            out_specs=pl.BlockSpec((tm, N_pad), lambda i: (i, 0)),
        )
        kernel = _fc_softmax_kernel
        semantics = ("parallel",)
    else:
        grid_spec = pltpu.PrefetchScalarGridSpec(
            num_scalar_prefetch=0,
            grid=(n_m_tiles, K_pad // tk),
            in_specs=[
                pl.BlockSpec((tm, tk), lambda i, k: (i, k)),      # x tile
                pl.BlockSpec((tk, N_pad), lambda i, k: (k, 0)),   # weight tile (streams K)
                pl.BlockSpec((1, N_pad), lambda i, k: (0, 0)),    # bias row
            ],
            out_specs=pl.BlockSpec((tm, N_pad), lambda i, k: (i, 0)),
            scratch_shapes=[pltpu.VMEM((tm, N_pad), jnp.float32)],
        )
        kernel = _fc_softmax_kernel_acc
        semantics = ("parallel", "arbitrary")

    out_padded = pl.pallas_call(
        kernel,
        out_shape=jax.ShapeDtypeStruct((M_pad, N_pad), out_dtype),
        grid_spec=grid_spec,
        compiler_params=pltpu.CompilerParams(
            dimension_semantics=semantics,
            vmem_limit_bytes=vmem_limit,
        ),
        cost_estimate=cost,
    )(x_p, w_p, b_p)

    return out_padded[:M, :out_channels]


def net_forward(x, w_p, b_p, out_channels):
    """softmax(x @ W + b, axis=1) using parameters pre-padded by prepare_params()."""
    return _forward_padded(x, w_p, b_p, out_channels=out_channels)


# TODO(synk): for output layers much wider than a few K lanes, the softmax would need
# online (tiled-N) renormalization; the classifier head here (N=10 -> padded 128) fits
# one lane-dense block.

if __name__ == "__main__":
    # Net(I) with I=32 input features and the fixed 10 output classes.
    batch = 8
    in_channels = 32
    out_channels = 10

    key = jax.random.PRNGKey(0)
    kx, kw, kb = jax.random.split(key, 3)

    x = jax.random.normal(kx, (batch, in_channels), dtype=jnp.float32)
    weight = jax.random.uniform(
        kw, (in_channels, out_channels), minval=-0.02, maxval=0.02, dtype=jnp.float32
    )
    bias = jax.random.uniform(
        kb, (out_channels,), minval=-0.02, maxval=0.02, dtype=jnp.float32
    )

    # One-time parameter preparation (analogue of module construction).
    w_p, b_p = prepare_params(weight, bias)

    out = net_forward(x, w_p, b_p, out_channels)
    out = jax.block_until_ready(out)

    # Reference: Net.forward == softmax(x @ W + b, dim=1), in f32.
    ref = jax.nn.softmax(x @ weight + bias, axis=1)
    assert out.shape == (batch, out_channels)
    assert jnp.allclose(out, ref, atol=5e-3, rtol=5e-3), float(jnp.max(jnp.abs(out - ref)))
    assert jnp.allclose(jnp.sum(out, axis=1), 1.0, atol=5e-3)

    print("KERNEL_OK")
</pallas_src>

<mosaic_0001>
module attributes {stable_mosaic.version = 11 : i64} {
  func.func @_fc_softmax_kernel(%arg0: i32, %arg1: memref<16x128xbf16, #tpu.memory_space<vmem>>, %arg2: memref<128x128xbf16, #tpu.memory_space<vmem>>, %arg3: memref<1x128xf32, #tpu.memory_space<vmem>>, %arg4: memref<16x128xf32, #tpu.memory_space<vmem>>) attributes {dimension_semantics = [#tpu.dimension_semantics<parallel>], iteration_bounds = array<i64: 1>, scalar_prefetch = 0 : i64, scratch_operands = 0 : i64, tpu.core_type = #tpu.core_type<tc>, window_params = [{transform_indices = @transform_0, window_bounds = array<i64: 16, 128>}, {pipeline_mode = #tpu.pipeline_mode<synchronous>, transform_indices = @transform_1, window_bounds = array<i64: 128, 128>}, {pipeline_mode = #tpu.pipeline_mode<synchronous>, transform_indices = @transform_2, window_bounds = array<i64: 1, 128>}, {transform_indices = @transform_3, window_bounds = array<i64: 16, 128>}]} {
    %c0 = arith.constant 0 : index
    %c0_0 = arith.constant 0 : index
    %0 = vector.load %arg1[%c0, %c0_0] : memref<16x128xbf16, #tpu.memory_space<vmem>>, vector<16x128xbf16>
    %c0_1 = arith.constant 0 : index
    %c0_2 = arith.constant 0 : index
    %1 = vector.load %arg2[%c0_1, %c0_2] : memref<128x128xbf16, #tpu.memory_space<vmem>>, vector<128x128xbf16>
    %cst = arith.constant dense<0.000000e+00> : vector<16x128xf32>
    %2 = tpu.matmul %0, %1, %cst {dimension_numbers = #tpu.dot_dimension_numbers<[1], [0], [0], [1], [0, 0, 1, 1], [], []>} : vector<16x128xbf16>, vector<128x128xbf16>, vector<16x128xf32> -> vector<16x128xf32>
    %c0_3 = arith.constant 0 : index
    %c0_4 = arith.constant 0 : index
    %3 = vector.load %arg3[%c0_3, %c0_4] : memref<1x128xf32, #tpu.memory_space<vmem>>, vector<1x128xf32>
    %4 = vector.broadcast %3 : vector<1x128xf32> to vector<16x128xf32>
    %5 = arith.addf %2, %4 : vector<16x128xf32>
    %cst_5 = arith.constant dense<0xFF800000> : vector<16xf32>
    %6 = vector.multi_reduction <maximumf>, %5, %cst_5 [1] : vector<16x128xf32> to vector<16xf32>
    %7 = vector.shape_cast %6 : vector<16xf32> to vector<16x1xf32>
    %8 = vector.broadcast %7 : vector<16x1xf32> to vector<16x128xf32>
    %9 = arith.subf %5, %8 : vector<16x128xf32>
    %10 = math.exp %9 : vector<16x128xf32>
    %cst_6 = arith.constant dense<0.000000e+00> : vector<16xf32>
    %11 = vector.multi_reduction <add>, %10, %cst_6 [1] : vector<16x128xf32> to vector<16xf32>
    %12 = vector.shape_cast %11 : vector<16xf32> to vector<16x1xf32>
    %13 = tpu.reciprocal %12 {approx = true} : vector<16x1xf32> -> vector<16x1xf32>
    %14 = vector.broadcast %13 : vector<16x1xf32> to vector<16x128xf32>
    %15 = arith.mulf %10, %14 : vector<16x128xf32>
    %c0_7 = arith.constant 0 : index
    %c0_8 = arith.constant 0 : index
    %16 = vector.load %arg4[%c0_7, %c0_8] : memref<16x128xf32, #tpu.memory_space<vmem>>, vector<16x128xf32>
    tpu.vector_store %arg4[%c0_7, %c0_8], %15 {strides = array<i32>} : memref<16x128xf32, #tpu.memory_space<vmem>>, vector<16x128xf32>,
    return
  }
  func.func @transform_0(%arg0: i32) -> (i32, i32) {
    %c0_i32 = arith.constant 0 : i32
    %c0_i32_0 = arith.constant 0 : i32
    return %arg0, %c0_i32 : i32, i32
  }
  func.func @transform_1(%arg0: i32) -> (i32, i32) {
    %c0_i32 = arith.constant 0 : i32
    %c0_i32_0 = arith.constant 0 : i32
    %c0_i32_1 = arith.constant 0 : i32
    return %c0_i32, %c0_i32_0 : i32, i32
  }
  func.func @transform_2(%arg0: i32) -> (i32, i32) {
    %c0_i32 = arith.constant 0 : i32
    %c0_i32_0 = arith.constant 0 : i32
    %c0_i32_1 = arith.constant 0 : i32
    return %c0_i32, %c0_i32_0 : i32, i32
  }
  func.func @transform_3(%arg0: i32) -> (i32, i32) {
    %c0_i32 = arith.constant 0 : i32
    %c0_i32_0 = arith.constant 0 : i32
    return %arg0, %c0_i32 : i32, i32
  }
}

</mosaic_0001>

<llo_original>
// kernel: _forward_padded.1
$region0: #{_forward_padded.1}
  #allocation0 [shape = 'u32[]', space=smem, size = 0x4, offset = 0x4, fixed_abs, tag = 'smem constant byte address 0x4 - core index']
  #allocation1 [shape = 'u32[144,128]{1,0:T(1,128)}', space=vmem, size = 0x12000, scoped, tag = 'internal scratch']
  %s0 = inlined_call_operand.vmem [shape: bf16[16,128], index: 0, kind: input, shape index: {}]
  %s1 = inlined_call_operand.hbm [shape: bf16[128,128], index: 1, kind: input, shape index: {}]
  %s2 = inlined_call_operand.vmem [shape: f32[1,128], index: 2, kind: input, shape index: {}]
  %s3 = inlined_call_operand.vmem [shape: f32[16,128], index: 3, kind: output, shape index: {}]
  %s4 = sld [smem:[#allocation0]]
  $region26: #{_forward_padded.1} parent=0
    _
  %s6 = ssub.s32 1, %s4
  %s7 = scalar_select 0, %s6, %s4
  $region1: #{_forward_padded.1} parent=0
    #allocation2 [shape = 'u8[32768]{0}', space=vmem, size = 0x8000, scoped, tag = 'input window, operand 1, single buffered']
    #allocation3 [shape = 's32[1]{0}', space=sflag, size = 0x4, scoped, tag = 'scoped memory for _forward_padded.1']
    %8 = vsyncpa [#allocation3], 0
    // Predicated region
    $region2: #{_forward_padded.1} parent=1 // pred_check
      _
    $region3: #{_forward_padded.1} parent=1 // pred_check_branch
      %10 = sbr.rel (0) target = $region5
    $region4: #{_forward_padded.1} parent=1 // pred_region
      _
    $region5: #{_forward_padded.1} parent=1 // pred_fallthru
      _
    // Predicated region
    $region6: #{_forward_padded.1} parent=1 // pred_check
      _
    $region7: #{_forward_padded.1} parent=1 // pred_check_branch
      %12 = sbr.rel (0) target = $region9
    $region8: #{_forward_padded.1} parent=1 // pred_region
      %s14 = ssub.s32 1024, 1024
      %15 = vsyncadd [#allocation3], %s14
      %s16 = sshll.u32 [#allocation2], 4
      %s17 = int_to_ptr.vmem [resolvable:$true] %s16
      %22 = dma.hbm_to_vmem [thread:$0]  %s1, 1024, %s17, [#allocation3], 64, 64, 4
    $region9: #{_forward_padded.1} parent=1 // pred_fallthru
      _
    // Predicated region
    $region10: #{_forward_padded.1} parent=1 // pred_check
      _
    $region11: #{_forward_padded.1} parent=1 // pred_check_branch
      %24 = sbr.rel (0) target = $region13
    $region12: #{_forward_padded.1} parent=1 // pred_region
      _
    $region13: #{_forward_padded.1} parent=1 // pred_fallthru
      _
    // Predicated region
    $region14: #{_forward_padded.1} parent=1 // pred_check
      _
    $region15: #{_forward_padded.1} parent=1 // pred_check_branch
      %26 = sbr.rel (0) target = $region17
    $region16: #{_forward_padded.1} parent=1 // pred_region
      %27 = dma.done [#allocation3], 1024
    $region17: #{_forward_padded.1} parent=1 // pred_fallthru
      _
    %v29 = vld [vmem:[%s0] sm:$0xf]
    %v30 = vld [vmem:[%s0 + $0x4] sm:$0xf]
    %v31 = vld [vmem:[#allocation2] sm:$0xf]
    %v32 = vld [vmem:[#allocation2 + $0x4] sm:$0xf]
    %v33 = vld [vmem:[#allocation2 + $0x8] sm:$0xf]
    %v34 = vld [vmem:[#allocation2 + $0xc] sm:$0xf]
    %v35 = vld [vmem:[#allocation2 + $0x10] sm:$0xf]
    %v36 = vld [vmem:[#allocation2 + $0x14] sm:$0xf]
    %v37 = vld [vmem:[#allocation2 + $0x18] sm:$0xf]
    %v38 = vld [vmem:[#allocation2 + $0x1c] sm:$0xf]
    %v39 = vld [vmem:[#allocation2 + $0x20] sm:$0xf]
    %v40 = vld [vmem:[#allocation2 + $0x24] sm:$0xf]
    %v41 = vld [vmem:[#allocation2 + $0x28] sm:$0xf]
    %v42 = vld [vmem:[#allocation2 + $0x2c] sm:$0xf]
    %v43 = vld [vmem:[#allocation2 + $0x30] sm:$0xf]
    %v44 = vld [vmem:[#allocation2 + $0x34] sm:$0xf]
    %v45 = vld [vmem:[#allocation2 + $0x38] sm:$0xf]
    %v46 = vld [vmem:[#allocation2 + $0x3c] sm:$0xf]
    %v47 = vld [vmem:[%s2] sm:$0x1]
    %v49 = vlaneseq
    %v50 = vshrl.u32 %v49, 7
    %v51 = vsub.s32 0, %v50
    %v52 = vrot.slane %v47, %v51
    %v56 = vunpack.c.l.b16 %v29
    %v57 = vunpack.c.l.b16 %v30
    %v58 = vpack.c.b16 %v57, %v56
    %v76 = vunpack.c.l.b16 %v31
    %v77 = vunpack.c.l.b16 %v32
    %v78 = vunpack.c.l.b16 %v33
    %v79 = vunpack.c.l.b16 %v34
    %v80 = vunpack.c.l.b16 %v35
    %v81 = vunpack.c.l.b16 %v36
    %v82 = vunpack.c.l.b16 %v37
    %v83 = vunpack.c.l.b16 %v38
    %v84 = vunpack.c.l.b16 %v39
    %v85 = vunpack.c.l.b16 %v40
    %v86 = vunpack.c.l.b16 %v41
    %v87 = vunpack.c.l.b16 %v42
    %v88 = vunpack.c.l.b16 %v43
    %v89 = vunpack.c.l.b16 %v44
    %v90 = vunpack.c.l.b16 %v45
    %v91 = vunpack.c.l.b16 %v46
    %v92 = vpack.c.b16 %v77, %v76
    %v93 = vpack.c.b16 %v79, %v78
    %v94 = vpack.c.b16 %v81, %v80
    %v95 = vpack.c.b16 %v83, %v82
    %v96 = vpack.c.b16 %v85, %v84
    %v97 = vpack.c.b16 %v87, %v86
    %v98 = vpack.c.b16 %v89, %v88
    %v99 = vpack.c.b16 %v91, %v90
    %108 = vmatprep.subr.bf16.mxu0 0
    %109 = vmatpush1.bf16.msra.mxu0 %v99
    %110 = vmatprep.subr.bf16.mxu0 0
    %111 = vmatpush1.bf16.msra.mxu0 %v98
    %112 = vmatprep.subr.bf16.mxu0 0
    %113 = vmatpush1.bf16.msra.mxu0 %v97
    %114 = vmatprep.subr.bf16.mxu0 0
    %115 = vmatpush1.bf16.msra.mxu0 %v96
    %116 = vmatprep.subr.bf16.mxu0 0
    %117 = vmatpush1.bf16.msra.mxu0 %v95
    %118 = vmatprep.subr.bf16.mxu0 0
    %119 = vmatpush1.bf16.msra.mxu0 %v94
    %120 = vmatprep.subr.bf16.mxu0 0
    %121 = vmatpush1.bf16.msra.mxu0 %v93
    %122 = vmatprep.subr.bf16.mxu0 0
    %123 = vmatpush1.bf16.msra.mxu0 %v92
    %124 = vmatprep.subr.bf16.mxu0 0
    %125 = vmatpush2.bf16.msra.mxu0 0
    %126 = vmatprep.subr.bf16.mxu0 0
    %127 = vmatpush2.bf16.msra.mxu0 0
    %128 = vmatprep.subr.bf16.mxu0 0
    %129 = vmatpush2.bf16.msra.mxu0 0
    %130 = vmatprep.subr.bf16.mxu0 0
    %131 = vmatpush2.bf16.msra.mxu0 0
    %132 = vmatprep.subr.bf16.mxu0 0
    %133 = vmatpush2.bf16.msra.mxu0 0
    %134 = vmatprep.subr.bf16.mxu0 0
    %135 = vmatpush2.bf16.msra.mxu0 0
    %136 = vmatprep.subr.bf16.mxu0 0
    %137 = vmatpush2.bf16.msra.mxu0 0
    %138 = vmatprep.subr.bf16.mxu0 0
    %139 = vmatpush2.bf16.msra.mxu0 0
    %140 = vmatprep.mubr.bf16.mxu0 0
    %141 = vmatmul.mubr.bf16.gmra.mxu0 %v58
    %v142 = vpop.f32.mrf.mxu0
    %v143 = vadd.f32 %v52, %v142
    %v144 = vpop.f32.mrf.mxu0
    %v145 = vpop.f32.mrf.mxu0
    %v146 = vadd.f32 %v52, %v145
    %v147 = vpop.f32.mrf.mxu0
    %148 = vdwg.mxu0
    %149 = vmax.xlane.f32.xlu0 %v143
    %v150 = vpop.xlane.xlu0 %149
    %151 = vmax.xlane.f32.xlu0 %v146
    %v152 = vpop.xlane.xlu0 %151
    %v153 = vsub.f32 %v143, %v150
    %v154 = vsub.f32 %v146, %v152
    %v155 = vmul.f32 %v153, 1.442695
    %v156 = vpow.pop %v155
    %v157 = vmul.f32 %v154, 1.442695
    %v158 = vpow.pop %v157
    %159 = vadd.xlane.f32.xlu0 %v156
    %v160 = vpop.xlane.xlu0 %159
    %161 = vadd.xlane.f32.xlu0 %v158
    %v162 = vpop.xlane.xlu0 %161
    %v163 = vrcp.pop %v160
    %v164 = vrcp.pop %v162
    %v165 = vmul.f32 %v156, %v163
    %v166 = vmul.f32 %v158, %v164
    %167 = vst [vmem:[%s3] sm:$0xff] %v165
    %168 = vst [vmem:[%s3 + $0x8] sm:$0xff] %v166
    // Predicated region
    $region18: #{_forward_padded.1} parent=1 // pred_check
      _
    $region19: #{_forward_padded.1} parent=1 // pred_check_branch
      %170 = sbr.rel (0) target = $region21
    $region20: #{_forward_padded.1} parent=1 // pred_region
      _
    $region21: #{_forward_padded.1} parent=1 // pred_fallthru
      _
    // Predicated region
    $region22: #{_forward_padded.1} parent=1 // pred_check
      _
    $region23: #{_forward_padded.1} parent=1 // pred_check_branch
      %172 = sbr.rel (0) target = $region25
    $region24: #{_forward_padded.1} parent=1 // pred_region
      _
    $region25: #{_forward_padded.1} parent=1 // pred_fallthru
      _
    %173 = vsyncpa [#allocation3], 1

</llo_original>
